<compile_context>
chip_gen: v7x
topology: tpu7x:2x2x1
jax: 0.10.0
libtpu: 0.0.40
codegen_flags: <defaults>
</compile_context>

<pallas_src>
import functools

import jax
import jax.numpy as jnp
from jax.experimental import pallas as pl
from jax.experimental.pallas import tpu as pltpu


def _round_up(x, m):
    return ((x + m - 1) // m) * m


def _ann_kernel(x_ref, w1_ref, b1_ref, w2_ref, b2_ref, w3_ref, b3_ref, o_ref):
    cdt = w1_ref.dtype                 # streaming / MXU dtype (e.g. bf16)
    x = x_ref[...].astype(cdt)         # in-kernel cast (VPU, hidden under DMA)

    # fc1 + relu1   (MXU matmul in cdt, f32 accumulate, f32 epilogue)
    h1 = jnp.dot(x, w1_ref[...], preferred_element_type=jnp.float32)
    h1 = jnp.maximum(h1 + b1_ref[...], 0.0)

    # fc2 + relu2
    h2 = jnp.dot(h1.astype(cdt), w2_ref[...], preferred_element_type=jnp.float32)
    h2 = jnp.maximum(h2 + b2_ref[...], 0.0)

    # fc3
    out = jnp.dot(h2.astype(cdt), w3_ref[...], preferred_element_type=jnp.float32)
    out = out + b3_ref[...]

    o_ref[...] = out.astype(o_ref.dtype)


@functools.partial(jax.jit,
                   static_argnames=("row_tile", "compute_dtype", "out_dtype"))
def ann_forward(x_enc, w1, b1, w2, b2, w3, b3,
                row_tile=4096, compute_dtype=jnp.bfloat16, out_dtype=None):
    """x_enc: (B, S, input_dim). Weights stored as (in_dim, out_dim)."""
    B, S, in_dim = x_enc.shape
    hid = w1.shape[1]
    out_dim = w3.shape[1]
    rows = B * S
    if out_dtype is None:
        out_dtype = x_enc.dtype        # PyTorch semantics: out dtype = in dtype

    # ---- Row tiling ---------------------------------------------------------
    # Single grid step when everything fits one tile (no forced split on
    # single-TC chips); multiple-of-16 sublanes (f32 & bf16 layouts).
    eff_tile = _round_up(min(row_tile, _round_up(rows, 16)), 16)
    grid_rows = pl.cdiv(rows, eff_tile)
    if grid_rows > 1 and grid_rows % 2 == 1:
        # Prefer an even step count so v7x's two TensorCores get balanced work.
        eff_tile = max(16, _round_up(pl.cdiv(rows, grid_rows + 1), 16))
        grid_rows = pl.cdiv(rows, eff_tile)

    # ---- Weight / bias prep (tiny, VMEM-resident across grid steps) ---------
    # Pad hidden dim to a full 128-lane width; zero pads are inert through
    # ReLU and the next matmul.
    hid_pad = _round_up(hid, 128)
    w1c = jnp.pad(w1, ((0, 0), (0, hid_pad - hid))).astype(compute_dtype)
    w2c = jnp.pad(w2, ((0, hid_pad - hid), (0, hid_pad - hid))).astype(compute_dtype)
    w3c = jnp.pad(w3, ((0, hid_pad - hid), (0, 0))).astype(compute_dtype)
    b1_2d = jnp.pad(b1, (0, hid_pad - hid)).reshape(1, hid_pad).astype(jnp.float32)
    b2_2d = jnp.pad(b2, (0, hid_pad - hid)).reshape(1, hid_pad).astype(jnp.float32)
    b3_2d = b3.reshape(1, out_dim).astype(jnp.float32)

    # x streams in its native dtype; no wrapper pad/cast (kernel casts in VMEM).
    x2d = x_enc.reshape(rows, in_dim)

    cbytes = jnp.dtype(compute_dtype).itemsize
    flops = 2 * rows * (in_dim * hid_pad + hid_pad * hid_pad + hid_pad * out_dim)
    bytes_accessed = (
        rows * in_dim * x_enc.dtype.itemsize                        # x stream
        + (in_dim * hid_pad + hid_pad * hid_pad + hid_pad * out_dim) * cbytes
        + (2 * hid_pad + out_dim) * 4                               # biases
        + rows * out_dim * jnp.dtype(out_dtype).itemsize            # output
    )

    out2d = pl.pallas_call(
        _ann_kernel,
        out_shape=jax.ShapeDtypeStruct((rows, out_dim), out_dtype),
        grid_spec=pltpu.PrefetchScalarGridSpec(
            num_scalar_prefetch=0,
            grid=(grid_rows,),
            in_specs=[
                pl.BlockSpec((eff_tile, in_dim), lambda i: (i, 0)),     # x rows
                pl.BlockSpec((in_dim, hid_pad), lambda i: (0, 0)),      # w1 (resident)
                pl.BlockSpec((1, hid_pad), lambda i: (0, 0)),           # b1
                pl.BlockSpec((hid_pad, hid_pad), lambda i: (0, 0)),     # w2 (resident)
                pl.BlockSpec((1, hid_pad), lambda i: (0, 0)),           # b2
                pl.BlockSpec((hid_pad, out_dim), lambda i: (0, 0)),     # w3 (resident)
                pl.BlockSpec((1, out_dim), lambda i: (0, 0)),           # b3
            ],
            out_specs=pl.BlockSpec((eff_tile, out_dim), lambda i: (i, 0)),
        ),
        compiler_params=pltpu.CompilerParams(
            dimension_semantics=("parallel",),
        ),
        cost_estimate=pl.CostEstimate(
            flops=flops, transcendentals=0, bytes_accessed=bytes_accessed),
    )(x2d, w1c, b1_2d, w2c, b2_2d, w3c, b3_2d)

    return out2d.reshape(B, S, out_dim)


def init_params(key, input_dim, hidden_dim, output_dim):
    """Deterministic PyTorch-Linear-style uniform init; weights as (in, out)."""
    ks = jax.random.split(key, 6)

    def linear(kw, kb, fan_in, fan_out):
        bound = 1.0 / jnp.sqrt(fan_in)
        w = jax.random.uniform(kw, (fan_in, fan_out), jnp.float32, -bound, bound)
        b = jax.random.uniform(kb, (fan_out,), jnp.float32, -bound, bound)
        return w, b

    w1, b1 = linear(ks[0], ks[1], input_dim, hidden_dim)
    w2, b2 = linear(ks[2], ks[3], hidden_dim, hidden_dim)
    w3, b3 = linear(ks[4], ks[5], hidden_dim, output_dim)
    return w1, b1, w2, b2, w3, b3


def _ref_forward(x_enc, w1, b1, w2, b2, w3, b3, compute_dtype=jnp.float32):
    """Pure-JAX reference mirroring the kernel's precision policy."""
    c = compute_dtype
    h1 = jnp.dot(x_enc.astype(c), w1.astype(c),
                 preferred_element_type=jnp.float32) + b1
    h1 = jnp.maximum(h1, 0.0)
    h2 = jnp.dot(h1.astype(c), w2.astype(c),
                 preferred_element_type=jnp.float32) + b2
    h2 = jnp.maximum(h2, 0.0)
    return jnp.dot(h2.astype(c), w3.astype(c),
                   preferred_element_type=jnp.float32) + b3


if __name__ == "__main__":
    input_dim, hidden_dim, output_dim = 16, 32, 8
    key = jax.random.PRNGKey(0)
    k_x1, k_x2, k_x3, k_p = jax.random.split(key, 4)
    w1, b1, w2, b2, w3, b3 = init_params(k_p, input_dim, hidden_dim, output_dim)

    # --- Test 1: small shape, full f32 path, exact vs f32 reference ---------
    B, S = 2, 8
    x_enc = jax.random.normal(k_x1, (B, S, input_dim), jnp.float32)
    # Unused forward args (interface parity with the PyTorch module).
    x_mark_enc = jnp.zeros((B, S, 4), jnp.float32)
    x_dec = jnp.zeros((B, S, input_dim), jnp.float32)
    x_mark_dec = jnp.zeros((B, S, 4), jnp.float32)
    label_len, pred_len = 4, 4  # unused by the forward pass

    out_f32 = ann_forward(x_enc, w1, b1, w2, b2, w3, b3,
                          compute_dtype=jnp.float32)
    out_f32 = jax.block_until_ready(out_f32)
    ref_f32 = _ref_forward(x_enc, w1, b1, w2, b2, w3, b3, jnp.float32)
    assert out_f32.shape == (B, S, output_dim)
    assert out_f32.dtype == jnp.float32
    assert jnp.allclose(out_f32, ref_f32, atol=1e-5, rtol=1e-5)

    # --- Test 2: ragged row count, default bf16-streaming path --------------
    B2, S2 = 3, 50  # rows=150 -> exercises partial last row-block handling
    x_enc2 = jax.random.normal(k_x2, (B2, S2, input_dim), jnp.float32)
    out_bf16 = ann_forward(x_enc2, w1, b1, w2, b2, w3, b3)   # bf16 streaming
    out_bf16 = jax.block_until_ready(out_bf16)
    ref_bf16 = _ref_forward(x_enc2, w1, b1, w2, b2, w3, b3, jnp.bfloat16)
    assert out_bf16.shape == (B2, S2, output_dim)
    assert out_bf16.dtype == jnp.float32          # follows x_enc dtype
    assert jnp.allclose(out_bf16, ref_bf16, atol=1e-3, rtol=1e-3)
    ref2_f32 = _ref_forward(x_enc2, w1, b1, w2, b2, w3, b3, jnp.float32)
    assert jnp.allclose(out_bf16, ref2_f32, atol=3e-2, rtol=3e-2)

    # --- Test 3: bf16 input -> bf16 output (halved output HBM stream) -------
    B3, S3 = 2, 24
    x_enc3 = jax.random.normal(k_x3, (B3, S3, input_dim), jnp.float32)
    out3 = ann_forward(x_enc3.astype(jnp.bfloat16), w1, b1, w2, b2, w3, b3)
    out3 = jax.block_until_ready(out3)
    assert out3.shape == (B3, S3, output_dim)
    assert out3.dtype == jnp.bfloat16
    ref3 = _ref_forward(x_enc3, w1, b1, w2, b2, w3, b3, jnp.float32)
    assert jnp.allclose(out3.astype(jnp.float32), ref3, atol=5e-2, rtol=5e-2)

    print("KERNEL_OK")
</pallas_src>

<mosaic_0001>
module attributes {stable_mosaic.version = 11 : i64} {
  func.func @_ann_kernel(%arg0: i32, %arg1: memref<16x16xf32, #tpu.memory_space<vmem>>, %arg2: memref<16x128xf32, #tpu.memory_space<vmem>>, %arg3: memref<1x128xf32, #tpu.memory_space<vmem>>, %arg4: memref<128x128xf32, #tpu.memory_space<vmem>>, %arg5: memref<1x128xf32, #tpu.memory_space<vmem>>, %arg6: memref<128x8xf32, #tpu.memory_space<vmem>>, %arg7: memref<1x8xf32, #tpu.memory_space<vmem>>, %arg8: memref<16x8xf32, #tpu.memory_space<vmem>>) attributes {dimension_semantics = [#tpu.dimension_semantics<parallel>], iteration_bounds = array<i64: 1>, scalar_prefetch = 0 : i64, scratch_operands = 0 : i64, tpu.core_type = #tpu.core_type<tc>, window_params = [{transform_indices = @transform_0, window_bounds = array<i64: 16, 16>}, {pipeline_mode = #tpu.pipeline_mode<synchronous>, transform_indices = @transform_1, window_bounds = array<i64: 16, 128>}, {pipeline_mode = #tpu.pipeline_mode<synchronous>, transform_indices = @transform_2, window_bounds = array<i64: 1, 128>}, {pipeline_mode = #tpu.pipeline_mode<synchronous>, transform_indices = @transform_3, window_bounds = array<i64: 128, 128>}, {pipeline_mode = #tpu.pipeline_mode<synchronous>, transform_indices = @transform_4, window_bounds = array<i64: 1, 128>}, {pipeline_mode = #tpu.pipeline_mode<synchronous>, transform_indices = @transform_5, window_bounds = array<i64: 128, 8>}, {pipeline_mode = #tpu.pipeline_mode<synchronous>, transform_indices = @transform_6, window_bounds = array<i64: 1, 8>}, {transform_indices = @transform_7, window_bounds = array<i64: 16, 8>}]} {
    %c0 = arith.constant 0 : index
    %c0_0 = arith.constant 0 : index
    %0 = vector.load %arg1[%c0, %c0_0] : memref<16x16xf32, #tpu.memory_space<vmem>>, vector<16x16xf32>
    %c0_1 = arith.constant 0 : index
    %c0_2 = arith.constant 0 : index
    %1 = vector.load %arg2[%c0_1, %c0_2] : memref<16x128xf32, #tpu.memory_space<vmem>>, vector<16x128xf32>
    %cst = arith.constant dense<0.000000e+00> : vector<16x128xf32>
    %2 = tpu.matmul %0, %1, %cst {dimension_numbers = #tpu.dot_dimension_numbers<[1], [0], [0], [1], [0, 0, 1, 1], [], []>} : vector<16x16xf32>, vector<16x128xf32>, vector<16x128xf32> -> vector<16x128xf32>
    %c0_3 = arith.constant 0 : index
    %c0_4 = arith.constant 0 : index
    %3 = vector.load %arg3[%c0_3, %c0_4] : memref<1x128xf32, #tpu.memory_space<vmem>>, vector<1x128xf32>
    %4 = vector.broadcast %3 : vector<1x128xf32> to vector<16x128xf32>
    %5 = arith.addf %2, %4 : vector<16x128xf32>
    %cst_5 = arith.constant 0.000000e+00 : f32
    %6 = vector.broadcast %cst_5 : f32 to vector<16x128xf32>
    %7 = arith.maximumf %5, %6 : vector<16x128xf32>
    %c0_6 = arith.constant 0 : index
    %c0_7 = arith.constant 0 : index
    %8 = vector.load %arg4[%c0_6, %c0_7] : memref<128x128xf32, #tpu.memory_space<vmem>>, vector<128x128xf32>
    %cst_8 = arith.constant dense<0.000000e+00> : vector<16x128xf32>
    %9 = tpu.matmul %7, %8, %cst_8 {dimension_numbers = #tpu.dot_dimension_numbers<[1], [0], [0], [1], [0, 0, 1, 1], [], []>} : vector<16x128xf32>, vector<128x128xf32>, vector<16x128xf32> -> vector<16x128xf32>
    %c0_9 = arith.constant 0 : index
    %c0_10 = arith.constant 0 : index
    %10 = vector.load %arg5[%c0_9, %c0_10] : memref<1x128xf32, #tpu.memory_space<vmem>>, vector<1x128xf32>
    %11 = vector.broadcast %10 : vector<1x128xf32> to vector<16x128xf32>
    %12 = arith.addf %9, %11 : vector<16x128xf32>
    %cst_11 = arith.constant 0.000000e+00 : f32
    %13 = vector.broadcast %cst_11 : f32 to vector<16x128xf32>
    %14 = arith.maximumf %12, %13 : vector<16x128xf32>
    %c0_12 = arith.constant 0 : index
    %c0_13 = arith.constant 0 : index
    %15 = vector.load %arg6[%c0_12, %c0_13] : memref<128x8xf32, #tpu.memory_space<vmem>>, vector<128x8xf32>
    %cst_14 = arith.constant dense<0.000000e+00> : vector<16x8xf32>
    %16 = tpu.matmul %14, %15, %cst_14 {dimension_numbers = #tpu.dot_dimension_numbers<[1], [0], [0], [1], [0, 0, 1, 1], [], []>} : vector<16x128xf32>, vector<128x8xf32>, vector<16x8xf32> -> vector<16x8xf32>
    %c0_15 = arith.constant 0 : index
    %c0_16 = arith.constant 0 : index
    %17 = vector.load %arg7[%c0_15, %c0_16] : memref<1x8xf32, #tpu.memory_space<vmem>>, vector<1x8xf32>
    %18 = vector.broadcast %17 : vector<1x8xf32> to vector<16x8xf32>
    %19 = arith.addf %16, %18 : vector<16x8xf32>
    %c0_17 = arith.constant 0 : index
    %c0_18 = arith.constant 0 : index
    %20 = vector.load %arg8[%c0_17, %c0_18] : memref<16x8xf32, #tpu.memory_space<vmem>>, vector<16x8xf32>
    tpu.vector_store %arg8[%c0_17, %c0_18], %19 {strides = array<i32>} : memref<16x8xf32, #tpu.memory_space<vmem>>, vector<16x8xf32>,
    return
  }
  func.func @transform_0(%arg0: i32) -> (i32, i32) {
    %c0_i32 = arith.constant 0 : i32
    %c0_i32_0 = arith.constant 0 : i32
    return %arg0, %c0_i32 : i32, i32
  }
  func.func @transform_1(%arg0: i32) -> (i32, i32) {
    %c0_i32 = arith.constant 0 : i32
    %c0_i32_0 = arith.constant 0 : i32
    %c0_i32_1 = arith.constant 0 : i32
    return %c0_i32, %c0_i32_0 : i32, i32
  }
  func.func @transform_2(%arg0: i32) -> (i32, i32) {
    %c0_i32 = arith.constant 0 : i32
    %c0_i32_0 = arith.constant 0 : i32
    %c0_i32_1 = arith.constant 0 : i32
    return %c0_i32, %c0_i32_0 : i32, i32
  }
  func.func @transform_3(%arg0: i32) -> (i32, i32) {
    %c0_i32 = arith.constant 0 : i32
    %c0_i32_0 = arith.constant 0 : i32
    %c0_i32_1 = arith.constant 0 : i32
    return %c0_i32, %c0_i32_0 : i32, i32
  }
  func.func @transform_4(%arg0: i32) -> (i32, i32) {
    %c0_i32 = arith.constant 0 : i32
    %c0_i32_0 = arith.constant 0 : i32
    %c0_i32_1 = arith.constant 0 : i32
    return %c0_i32, %c0_i32_0 : i32, i32
  }
  func.func @transform_5(%arg0: i32) -> (i32, i32) {
    %c0_i32 = arith.constant 0 : i32
    %c0_i32_0 = arith.constant 0 : i32
    %c0_i32_1 = arith.constant 0 : i32
    return %c0_i32, %c0_i32_0 : i32, i32
  }
  func.func @transform_6(%arg0: i32) -> (i32, i32) {
    %c0_i32 = arith.constant 0 : i32
    %c0_i32_0 = arith.constant 0 : i32
    %c0_i32_1 = arith.constant 0 : i32
    return %c0_i32, %c0_i32_0 : i32, i32
  }
  func.func @transform_7(%arg0: i32) -> (i32, i32) {
    %c0_i32 = arith.constant 0 : i32
    %c0_i32_0 = arith.constant 0 : i32
    return %arg0, %c0_i32 : i32, i32
  }
}

</mosaic_0001>

<llo_original>
// kernel: ann_forward.1
$region0: #{ann_forward.1}
  #allocation0 [shape = 'u32[]', space=smem, size = 0x4, offset = 0x4, fixed_abs, tag = 'smem constant byte address 0x4 - core index']
  #allocation1 [shape = 'u32[144,128]{1,0:T(1,128)}', space=vmem, size = 0x12000, scoped, tag = 'internal scratch']
  %s0 = inlined_call_operand.vmem [shape: f32[16,16], index: 0, kind: input, shape index: {}]
  %s1 = inlined_call_operand.vmem [shape: f32[16,128], index: 1, kind: input, shape index: {}]
  %s2 = inlined_call_operand.vmem [shape: f32[1,128], index: 2, kind: input, shape index: {}]
  %s3 = inlined_call_operand.vmem [shape: f32[128,128], index: 3, kind: input, shape index: {}]
  %s4 = inlined_call_operand.vmem [shape: f32[1,128], index: 4, kind: input, shape index: {}]
  %s5 = inlined_call_operand.vmem [shape: f32[128,8], index: 5, kind: input, shape index: {}]
  %s6 = inlined_call_operand.vmem [shape: f32[1,8], index: 6, kind: input, shape index: {}]
  %s7 = inlined_call_operand.hbm [shape: f32[16,8], index: 7, kind: output, shape index: {}]
  %s8 = sld [smem:[#allocation0]]
  $region38: #{ann_forward.1} parent=0
    _
  %s10 = ssub.s32 1, %s8
  %s11 = scalar_select 0, %s10, %s8
  $region1: #{ann_forward.1} parent=0
    #allocation2 [shape = 'u8[8192]{0}', space=vmem, size = 0x2000, scoped, tag = 'output window, operand 0, single buffered']
    #allocation3 [shape = 's32[1]{0}', space=sflag, size = 0x4, scoped, tag = 'scoped memory for ann_forward.1']
    %12 = vsyncpa [#allocation3], 0
    // Predicated region
    $region2: #{ann_forward.1} parent=1 // pred_check
      _
    $region3: #{ann_forward.1} parent=1 // pred_check_branch
      %14 = sbr.rel (0) target = $region5
    $region4: #{ann_forward.1} parent=1 // pred_region
      _
    $region5: #{ann_forward.1} parent=1 // pred_fallthru
      _
    // Predicated region
    $region6: #{ann_forward.1} parent=1 // pred_check
      _
    $region7: #{ann_forward.1} parent=1 // pred_check_branch
      %16 = sbr.rel (0) target = $region9
    $region8: #{ann_forward.1} parent=1 // pred_region
      _
    $region9: #{ann_forward.1} parent=1 // pred_fallthru
      _
    // Predicated region
    $region10: #{ann_forward.1} parent=1 // pred_check
      _
    $region11: #{ann_forward.1} parent=1 // pred_check_branch
      %18 = sbr.rel (0) target = $region13
    $region12: #{ann_forward.1} parent=1 // pred_region
      _
    $region13: #{ann_forward.1} parent=1 // pred_fallthru
      _
    // Predicated region
    $region14: #{ann_forward.1} parent=1 // pred_check
      _
    $region15: #{ann_forward.1} parent=1 // pred_check_branch
      %20 = sbr.rel (0) target = $region17
    $region16: #{ann_forward.1} parent=1 // pred_region
      _
    $region17: #{ann_forward.1} parent=1 // pred_fallthru
      _
    // Predicated region
    $region18: #{ann_forward.1} parent=1 // pred_check
      _
    $region19: #{ann_forward.1} parent=1 // pred_check_branch
      %22 = sbr.rel (0) target = $region21
    $region20: #{ann_forward.1} parent=1 // pred_region
      _
    $region21: #{ann_forward.1} parent=1 // pred_fallthru
      _
    // Predicated region
    $region22: #{ann_forward.1} parent=1 // pred_check
      _
    $region23: #{ann_forward.1} parent=1 // pred_check_branch
      %24 = sbr.rel (0) target = $region25
    $region24: #{ann_forward.1} parent=1 // pred_region
      _
    $region25: #{ann_forward.1} parent=1 // pred_fallthru
      _
    // Predicated region
    $region26: #{ann_forward.1} parent=1 // pred_check
      _
    $region27: #{ann_forward.1} parent=1 // pred_check_branch
      %26 = sbr.rel (0) target = $region29
    $region28: #{ann_forward.1} parent=1 // pred_region
      _
    $region29: #{ann_forward.1} parent=1 // pred_fallthru
      _
    %v27 = vld [vmem:[%s0] sm:$0xff]
    %v28 = vld [vmem:[%s0 + $0x8] sm:$0xff]
    %v29 = vld [vmem:[%s1] sm:$0xff]
    %v30 = vld [vmem:[%s1 + $0x8] sm:$0xff]
    %v31 = vld [vmem:[%s2] sm:$0x1]
    %v33 = vlaneseq
    %v34 = vshrl.u32 %v33, 7
    %v35 = vsub.s32 0, %v34
    %v36 = vrot.slane %v31, %v35
    %vm38 = vcmask 130048
    %v40 = vsel %vm38, %v27, 0
    %v43 = vsel %vm38, %v28, 0
    %45 = vmatprep.subr.mxu0 0.0
    %46 = vmatpush1.msra.mxu0 %v29
    %47 = vmatprep.subr.mxu0 0.0
    %48 = vmatpush1.msra.mxu0 %v30
    %49 = vmatprep.subr.mxu0 0.0
    %50 = vmatpush1.msra.mxu0 0.0
    %51 = vmatprep.subr.mxu0 0.0
    %52 = vmatpush1.msra.mxu0 0.0
    %53 = vmatprep.subr.mxu0 0.0
    %54 = vmatpush1.msra.mxu0 0.0
    %55 = vmatprep.subr.mxu0 0.0
    %56 = vmatpush1.msra.mxu0 0.0
    %57 = vmatprep.subr.mxu0 0.0
    %58 = vmatpush1.msra.mxu0 0.0
    %59 = vmatprep.subr.mxu0 0.0
    %60 = vmatpush1.msra.mxu0 0.0
    %61 = vmatprep.subr.mxu0 0.0
    %62 = vmatpush1.msra.mxu0 0.0
    %63 = vmatprep.subr.mxu0 0.0
    %64 = vmatpush1.msra.mxu0 0.0
    %65 = vmatprep.subr.mxu0 0.0
    %66 = vmatpush1.msra.mxu0 0.0
    %67 = vmatprep.subr.mxu0 0.0
    %68 = vmatpush1.msra.mxu0 0.0
    %69 = vmatprep.subr.mxu0 0.0
    %70 = vmatpush1.msra.mxu0 0.0
    %71 = vmatprep.subr.mxu0 0.0
    %72 = vmatpush1.msra.mxu0 0.0
    %73 = vmatprep.subr.mxu0 0.0
    %74 = vmatpush1.msra.mxu0 0.0
    %75 = vmatprep.subr.mxu0 0.0
    %76 = vmatpush1.msra.mxu0 0.0
    %77 = vmatprep.subr.mxu0 0.0
    %78 = vmatpush1.msra.mxu0 0.0
    %79 = vmatprep.subr.mxu0 0.0
    %80 = vmatpush1.msra.mxu0 0.0
    %81 = vmatprep.subr.mxu0 0.0
    %82 = vmatpush1.msra.mxu0 0.0
    %83 = vmatprep.subr.mxu0 0.0
    %84 = vmatpush1.msra.mxu0 0.0
    %85 = vmatprep.subr.mxu0 0.0
    %86 = vmatpush1.msra.mxu0 0.0
    %87 = vmatprep.subr.mxu0 0.0
    %88 = vmatpush1.msra.mxu0 0.0
    %89 = vmatprep.subr.mxu0 0.0
    %90 = vmatpush1.msra.mxu0 0.0
    %91 = vmatprep.subr.mxu0 0.0
    %92 = vmatpush1.msra.mxu0 0.0
    %93 = vmatprep.subr.mxu0 0.0
    %94 = vmatpush1.msra.mxu0 0.0
    %95 = vmatprep.subr.mxu0 0.0
    %96 = vmatpush1.msra.mxu0 0.0
    %97 = vmatprep.subr.mxu0 0.0
    %98 = vmatpush1.msra.mxu0 0.0
    %99 = vmatprep.subr.mxu0 0.0
    %100 = vmatpush1.msra.mxu0 0.0
    %101 = vmatprep.subr.mxu0 0.0
    %102 = vmatpush1.msra.mxu0 0.0
    %103 = vmatprep.subr.mxu0 0.0
    %104 = vmatpush1.msra.mxu0 0.0
    %105 = vmatprep.subr.mxu0 0.0
    %106 = vmatpush1.msra.mxu0 0.0
    %107 = vmatprep.subr.mxu0 0.0
    %108 = vmatpush1.msra.mxu0 0.0
    %109 = vmatprep.mubr.f32.mxu0 0.0
    %110 = vmatmul.mubr.f32.gmra.mrb[0].mxu0 %v40
    %v111 = vpop.f32.mrb[0].mxu0
    %v112 = vadd.f32 %v36, %v111
    %v113 = vpop.f32.mrb[0].mxu0
    %114 = vmatprep.mubr.f32.mxu0 0.0
    %115 = vmatmul.mubr.f32.gmra.mrb[0].mxu0 %v43
    %v116 = vpop.f32.mrb[0].mxu0
    %v117 = vadd.f32 %v36, %v116
    %v118 = vpop.f32.mrb[0].mxu0
    %119 = vdwg.mxu0
    %v120 = vmax.f32 %v112, 0.0
    %v121 = vmax.f32 %v117, 0.0
    %v122 = vld [vmem:[%s3] sm:$0xff]
    %v123 = vld [vmem:[%s3 + $0x8] sm:$0xff]
    %v124 = vld [vmem:[%s3 + $0x10] sm:$0xff]
    %v125 = vld [vmem:[%s3 + $0x18] sm:$0xff]
    %v126 = vld [vmem:[%s3 + $0x20] sm:$0xff]
    %v127 = vld [vmem:[%s3 + $0x28] sm:$0xff]
    %v128 = vld [vmem:[%s3 + $0x30] sm:$0xff]
    %v129 = vld [vmem:[%s3 + $0x38] sm:$0xff]
    %v130 = vld [vmem:[%s3 + $0x40] sm:$0xff]
    %v131 = vld [vmem:[%s3 + $0x48] sm:$0xff]
    %v132 = vld [vmem:[%s3 + $0x50] sm:$0xff]
    %v133 = vld [vmem:[%s3 + $0x58] sm:$0xff]
    %v134 = vld [vmem:[%s3 + $0x60] sm:$0xff]
    %v135 = vld [vmem:[%s3 + $0x68] sm:$0xff]
    %v136 = vld [vmem:[%s3 + $0x70] sm:$0xff]
    %v137 = vld [vmem:[%s3 + $0x78] sm:$0xff]
    %v138 = vld [vmem:[%s4] sm:$0x1]
    %v140 = vlaneseq
    %v141 = vshrl.u32 %v140, 7
    %v142 = vsub.s32 0, %v141
    %v143 = vrot.slane %v138, %v142
    %145 = vmatprep.subr.mxu0 0.0
    %146 = vmatpush1.msra.mxu0 %v122
    %147 = vmatprep.subr.mxu0 0.0
    %148 = vmatpush1.msra.mxu0 %v123
    %149 = vmatprep.subr.mxu0 0.0
    %150 = vmatpush1.msra.mxu0 %v124
    %151 = vmatprep.subr.mxu0 0.0
    %152 = vmatpush1.msra.mxu0 %v125
    %153 = vmatprep.subr.mxu0 0.0
    %154 = vmatpush1.msra.mxu0 %v126
    %155 = vmatprep.subr.mxu0 0.0
    %156 = vmatpush1.msra.mxu0 %v127
    %157 = vmatprep.subr.mxu0 0.0
    %158 = vmatpush1.msra.mxu0 %v128
    %159 = vmatprep.subr.mxu0 0.0
    %160 = vmatpush1.msra.mxu0 %v129
    %161 = vmatprep.subr.mxu0 0.0
    %162 = vmatpush1.msra.mxu0 %v130
    %163 = vmatprep.subr.mxu0 0.0
    %164 = vmatpush1.msra.mxu0 %v131
    %165 = vmatprep.subr.mxu0 0.0
    %166 = vmatpush1.msra.mxu0 %v132
    %167 = vmatprep.subr.mxu0 0.0
    %168 = vmatpush1.msra.mxu0 %v133
    %169 = vmatprep.subr.mxu0 0.0
    %170 = vmatpush1.msra.mxu0 %v134
    %171 = vmatprep.subr.mxu0 0.0
    %172 = vmatpush1.msra.mxu0 %v135
    %173 = vmatprep.subr.mxu0 0.0
    %174 = vmatpush1.msra.mxu0 %v136
    %175 = vmatprep.subr.mxu0 0.0
    %176 = vmatpush1.msra.mxu0 %v137
    %177 = vmatprep.subr.mxu0 0.0
    %178 = vmatpush1.msra.mxu0 0.0
    %179 = vmatprep.subr.mxu0 0.0
    %180 = vmatpush1.msra.mxu0 0.0
    %181 = vmatprep.subr.mxu0 0.0
    %182 = vmatpush1.msra.mxu0 0.0
    %183 = vmatprep.subr.mxu0 0.0
    %184 = vmatpush1.msra.mxu0 0.0
    %185 = vmatprep.subr.mxu0 0.0
    %186 = vmatpush1.msra.mxu0 0.0
    %187 = vmatprep.subr.mxu0 0.0
    %188 = vmatpush1.msra.mxu0 0.0
    %189 = vmatprep.subr.mxu0 0.0
    %190 = vmatpush1.msra.mxu0 0.0
    %191 = vmatprep.subr.mxu0 0.0
    %192 = vmatpush1.msra.mxu0 0.0
    %193 = vmatprep.subr.mxu0 0.0
    %194 = vmatpush1.msra.mxu0 0.0
    %195 = vmatprep.subr.mxu0 0.0
    %196 = vmatpush1.msra.mxu0 0.0
    %197 = vmatprep.subr.mxu0 0.0
    %198 = vmatpush1.msra.mxu0 0.0
    %199 = vmatprep.subr.mxu0 0.0
    %200 = vmatpush1.msra.mxu0 0.0
    %201 = vmatprep.subr.mxu0 0.0
    %202 = vmatpush1.msra.mxu0 0.0
    %203 = vmatprep.subr.mxu0 0.0
    %204 = vmatpush1.msra.mxu0 0.0
    %205 = vmatprep.subr.mxu0 0.0
    %206 = vmatpush1.msra.mxu0 0.0
    %207 = vmatprep.subr.mxu0 0.0
    %208 = vmatpush1.msra.mxu0 0.0
    %209 = vmatprep.mubr.f32.mxu0 0.0
    %210 = vmatmul.mubr.f32.gmra.mrb[0].mxu0 %v120
    %v211 = vpop.f32.mrb[0].mxu0
    %v212 = vadd.f32 %v143, %v211
    %v213 = vpop.f32.mrb[0].mxu0
    %214 = vmatprep.mubr.f32.mxu0 0.0
    %215 = vmatmul.mubr.f32.gmra.mrb[0].mxu0 %v121
    %v216 = vpop.f32.mrb[0].mxu0
    %v217 = vadd.f32 %v143, %v216
    %v218 = vpop.f32.mrb[0].mxu0
    %219 = vdwg.mxu0
    %v220 = vmax.f32 %v212, 0.0
    %v221 = vmax.f32 %v217, 0.0
    %v222 = vld [vmem:[%s5] sm:$0xff]
    %v223 = vld [vmem:[%s5 + $0x8] sm:$0xff]
    %v224 = vld [vmem:[%s5 + $0x10] sm:$0xff]
    %v225 = vld [vmem:[%s5 + $0x18] sm:$0xff]
    %v226 = vld [vmem:[%s5 + $0x20] sm:$0xff]
    %v227 = vld [vmem:[%s5 + $0x28] sm:$0xff]
    %v228 = vld [vmem:[%s5 + $0x30] sm:$0xff]
    %v229 = vld [vmem:[%s5 + $0x38] sm:$0xff]
    %v230 = vld [vmem:[%s5 + $0x40] sm:$0xff]
    %v231 = vld [vmem:[%s5 + $0x48] sm:$0xff]
    %v232 = vld [vmem:[%s5 + $0x50] sm:$0xff]
    %v233 = vld [vmem:[%s5 + $0x58] sm:$0xff]
    %v234 = vld [vmem:[%s5 + $0x60] sm:$0xff]
    %v235 = vld [vmem:[%s5 + $0x68] sm:$0xff]
    %v236 = vld [vmem:[%s5 + $0x70] sm:$0xff]
    %v237 = vld [vmem:[%s5 + $0x78] sm:$0xff]
    %v238 = vld [vmem:[%s6] sm:$0x1]
    %v240 = vlaneseq
    %v241 = vshrl.u32 %v240, 7
    %v242 = vsub.s32 0, %v241
    %v243 = vrot.slane %v238, %v242
    %245 = vmatprep.subr.mxu0 0.0
    %246 = vmatpush1.msra.mxu0 %v222
    %247 = vmatprep.subr.mxu0 0.0
    %248 = vmatpush1.msra.mxu0 %v223
    %249 = vmatprep.subr.mxu0 0.0
    %250 = vmatpush1.msra.mxu0 %v224
    %251 = vmatprep.subr.mxu0 0.0
    %252 = vmatpush1.msra.mxu0 %v225
    %253 = vmatprep.subr.mxu0 0.0
    %254 = vmatpush1.msra.mxu0 %v226
    %255 = vmatprep.subr.mxu0 0.0
    %256 = vmatpush1.msra.mxu0 %v227
    %257 = vmatprep.subr.mxu0 0.0
    %258 = vmatpush1.msra.mxu0 %v228
    %259 = vmatprep.subr.mxu0 0.0
    %260 = vmatpush1.msra.mxu0 %v229
    %261 = vmatprep.subr.mxu0 0.0
    %262 = vmatpush1.msra.mxu0 %v230
    %263 = vmatprep.subr.mxu0 0.0
    %264 = vmatpush1.msra.mxu0 %v231
    %265 = vmatprep.subr.mxu0 0.0
    %266 = vmatpush1.msra.mxu0 %v232
    %267 = vmatprep.subr.mxu0 0.0
    %268 = vmatpush1.msra.mxu0 %v233
    %269 = vmatprep.subr.mxu0 0.0
    %270 = vmatpush1.msra.mxu0 %v234
    %271 = vmatprep.subr.mxu0 0.0
    %272 = vmatpush1.msra.mxu0 %v235
    %273 = vmatprep.subr.mxu0 0.0
    %274 = vmatpush1.msra.mxu0 %v236
    %275 = vmatprep.subr.mxu0 0.0
    %276 = vmatpush1.msra.mxu0 %v237
    %277 = vmatprep.subr.mxu0 0.0
    %278 = vmatpush1.msra.mxu0 0.0
    %279 = vmatprep.subr.mxu0 0.0
    %280 = vmatpush1.msra.mxu0 0.0
    %281 = vmatprep.subr.mxu0 0.0
    %282 = vmatpush1.msra.mxu0 0.0
    %283 = vmatprep.subr.mxu0 0.0
    %284 = vmatpush1.msra.mxu0 0.0
    %285 = vmatprep.subr.mxu0 0.0
    %286 = vmatpush1.msra.mxu0 0.0
    %287 = vmatprep.subr.mxu0 0.0
    %288 = vmatpush1.msra.mxu0 0.0
    %289 = vmatprep.subr.mxu0 0.0
    %290 = vmatpush1.msra.mxu0 0.0
    %291 = vmatprep.subr.mxu0 0.0
    %292 = vmatpush1.msra.mxu0 0.0
    %293 = vmatprep.subr.mxu0 0.0
    %294 = vmatpush1.msra.mxu0 0.0
    %295 = vmatprep.subr.mxu0 0.0
    %296 = vmatpush1.msra.mxu0 0.0
    %297 = vmatprep.subr.mxu0 0.0
    %298 = vmatpush1.msra.mxu0 0.0
    %299 = vmatprep.subr.mxu0 0.0
    %300 = vmatpush1.msra.mxu0 0.0
    %301 = vmatprep.subr.mxu0 0.0
    %302 = vmatpush1.msra.mxu0 0.0
    %303 = vmatprep.subr.mxu0 0.0
    %304 = vmatpush1.msra.mxu0 0.0
    %305 = vmatprep.subr.mxu0 0.0
    %306 = vmatpush1.msra.mxu0 0.0
    %307 = vmatprep.subr.mxu0 0.0
    %308 = vmatpush1.msra.mxu0 0.0
    %309 = vmatprep.mubr.f32.mxu0 0.0
    %310 = vmatmul.mubr.f32.gmra.mrb[0].mxu0 %v220
    %v311 = vpop.f32.mrb[0].mxu0
    %v312 = vadd.f32 %v243, %v311
    %v313 = vpop.f32.mrb[0].mxu0
    %314 = vmatprep.mubr.f32.mxu0 0.0
    %315 = vmatmul.mubr.f32.gmra.mrb[0].mxu0 %v221
    %v316 = vpop.f32.mrb[0].mxu0
    %v317 = vadd.f32 %v243, %v316
    %v318 = vpop.f32.mrb[0].mxu0
    %319 = vdwg.mxu0
    %vm320 = vcmask 64512
    %321 = vst.msk [vmem:[#allocation2] sm:$0xff] %vm320, %v312
    %322 = vst.msk [vmem:[#allocation2 + $0x8] sm:$0xff] %vm320, %v317
    // Predicated region
    $region30: #{ann_forward.1} parent=1 // pred_check
      _
    $region31: #{ann_forward.1} parent=1 // pred_check_branch
      %324 = sbr.rel (0) target = $region33
    $region32: #{ann_forward.1} parent=1 // pred_region
      %s326 = ssub.s32 256, 256
      %327 = vsyncadd [#allocation3], %s326
      %s328 = sshll.u32 [#allocation2], 4
      %s329 = int_to_ptr.vmem [resolvable:$true] %s328
      %334 = dma.vmem_to_hbm [thread:$0]  %s329, 256, %s7, [#allocation3], 128, 128, 8
    $region33: #{ann_forward.1} parent=1 // pred_fallthru
      _
    // Predicated region
    $region34: #{ann_forward.1} parent=1 // pred_check
      _
    $region35: #{ann_forward.1} parent=1 // pred_check_branch
      %336 = sbr.rel (0) target = $region37
    $region36: #{ann_forward.1} parent=1 // pred_region
      %337 = dma.done [#allocation3], 256
    $region37: #{ann_forward.1} parent=1 // pred_fallthru
      _
    %338 = vsyncpa [#allocation3], 1

</llo_original>
